<compile_context>
chip_gen: v5e
topology: v5e:2x2
jax: 0.10.0
libtpu: 0.0.40
codegen_flags: <defaults>
</compile_context>

<pallas_src>
import functools

import jax
import jax.numpy as jnp
from jax.experimental import pallas as pl
from jax.experimental.pallas import tpu as pltpu


def _fused_cnn_kernel(x_ref, bw_ref, b_ref, o_ref, *, silu_flags):
    """Fused CNN forward for one image of the batch.

    x_ref  : [1, H, W*C]       lane-dense input (channels zero-padded to C)
    bw_ref : [L, 3, W*C, W*C]  per-layer banded (block-Toeplitz) weights, one
                               [W*C, W*C] matrix per kernel row dy
    b_ref  : [L, 1, W*C]       per-layer bias broadcast over width
    o_ref  : [1, H, W*C]       lane-dense output (first 3 channels per pixel valid)
    """
    h = o_ref.shape[1]
    wc = o_ref.shape[2]

    act = x_ref[0].astype(jnp.float32)           # [H, W*C] -- lives in vregs
    zrow = jnp.zeros((1, wc), jnp.float32)

    for l, silu in enumerate(silu_flags):        # static unroll over layers
        # Three dense MXU matmuls (K = N = W*C) replace 9 tiny K=C matmuls.
        q0 = jnp.dot(act, bw_ref[l, 0], preferred_element_type=jnp.float32)
        q1 = jnp.dot(act, bw_ref[l, 1], preferred_element_type=jnp.float32)
        q2 = jnp.dot(act, bw_ref[l, 2], preferred_element_type=jnp.float32)

        # Vertical 'same' padding: out[y] = q0[y-1] + q1[y] + q2[y+1], OOB = 0.
        acc = q1
        acc = acc + jnp.concatenate([zrow, q0[: h - 1]], axis=0)
        acc = acc + jnp.concatenate([q2[1:], zrow], axis=0)
        acc = acc + b_ref[l]                     # [1, W*C] broadcast

        if silu:
            # SiLU = x * sigmoid(x); reciprocal kept exact for f32 parity.
            acc = acc * pl.reciprocal(1.0 + jnp.exp(-acc), approx=False)
        act = acc

    o_ref[0] = act.astype(o_ref.dtype)


def _banded_weights(w_hwio, bias, c, w):
    """Convert a 3x3 HWIO conv weight into 3 banded [W*C, W*C] matrices.

    BW[dy][xin*C + ci, xout*C + co] = w[dy, xin - xout + 1, ci, co] on the band
    (|xin - xout| <= 1), zero elsewhere -- so `row @ BW[dy]` applies kernel row
    dy with horizontal 'same' padding baked in.  In/out channels are
    zero-padded up to C so every layer uses the same lane-dense layout.
    """
    cin, cout = w_hwio.shape[2], w_hwio.shape[3]
    wp = jnp.zeros((3, 3, c, c), jnp.float32).at[:, :, :cin, :cout].set(w_hwio)

    xin = jnp.arange(w)[:, None]                 # [W, 1]
    xout = jnp.arange(w)[None, :]                # [1, W]
    dx = xin - xout + 1                          # [W, W]
    valid = (dx >= 0) & (dx <= 2)
    dxc = jnp.clip(dx, 0, 2)

    bw = wp[:, dxc]                              # [3, W, W, C, C]
    bw = jnp.where(valid[None, :, :, None, None], bw, 0.0)
    bw = bw.transpose(0, 1, 3, 2, 4).reshape(3, w * c, w * c)

    bvec = jnp.zeros((c,), jnp.float32).at[:cout].set(bias)
    bvec = jnp.tile(bvec, w).reshape(1, w * c)   # [1, W*C]
    return bw, bvec


def init_params(key, config):
    """Deterministic synthetic parameters matching the module's shapes (HWIO)."""
    c = config["nb_channel"]
    nb_layer = config["nb_layer"]
    params = {}
    keys = jax.random.split(key, 2 * (nb_layer + 2))

    def conv_init(kw, kb, cin, cout):
        fan_in = cin * 9
        bound = 1.0 / jnp.sqrt(fan_in)
        wt = jax.random.uniform(kw, (3, 3, cin, cout), jnp.float32, -bound, bound)
        bs = jax.random.uniform(kb, (cout,), jnp.float32, -bound, bound)
        return wt, bs

    params["first"] = conv_init(keys[0], keys[1], 3, c)
    params["layer"] = [
        conv_init(keys[2 + 2 * i], keys[3 + 2 * i], c, c) for i in range(nb_layer)
    ]
    params["last"] = conv_init(keys[2 + 2 * nb_layer], keys[3 + 2 * nb_layer], c, 3)
    return params


def cnn_forward(params, x_nchw, config):
    """Full CNN forward. x_nchw: [N, 3, H, W] -> [N, 3, H, W]."""
    n, cin_img, h, w = x_nchw.shape
    c = config["nb_channel"]
    assert c >= 3, "internal channel count must hold the 3 image channels"
    wc = w * c

    # NCHW -> NHWC, zero-pad channels to C, fold channels into the lane axis.
    x = jnp.transpose(x_nchw, (0, 2, 3, 1))
    x = jnp.pad(x, ((0, 0), (0, 0), (0, 0), (0, c - cin_img)))
    x = x.reshape(n, h, wc)

    layer_params = [params["first"]] + list(params["layer"]) + [params["last"]]
    silu_flags = tuple([False] + [True] * len(params["layer"]) + [False])

    bws, bvs = [], []
    for (wt, bs) in layer_params:
        bw, bv = _banded_weights(wt, bs, c, w)
        bws.append(bw)
        bvs.append(bv)
    bw_all = jnp.stack(bws)                      # [L, 3, W*C, W*C]
    b_all = jnp.stack(bvs)                       # [L, 1, W*C]
    num_layers = len(layer_params)

    kernel = functools.partial(_fused_cnn_kernel, silu_flags=silu_flags)
    out = pl.pallas_call(
        kernel,
        out_shape=jax.ShapeDtypeStruct((n, h, wc), x.dtype),
        grid=(n,),
        in_specs=[
            pl.BlockSpec((1, h, wc), lambda i: (i, 0, 0)),
            pl.BlockSpec((num_layers, 3, wc, wc), lambda i: (0, 0, 0, 0)),
            pl.BlockSpec((num_layers, 1, wc), lambda i: (0, 0, 0)),
        ],
        out_specs=pl.BlockSpec((1, h, wc), lambda i: (i, 0, 0)),
        compiler_params=pltpu.CompilerParams(
            dimension_semantics=("parallel",)),
    )(x, bw_all, b_all)

    # [N, H, W*C] -> [N, H, W, C] -> keep the 3 valid output channels -> NCHW.
    out = out.reshape(n, h, w, c)[..., :3]
    return jnp.transpose(out, (0, 3, 1, 2))


def cnn_forward_ref(params, x_nchw):
    """Pure-JAX reference (lax conv, exact f32) for correctness check."""
    x = jnp.transpose(x_nchw, (0, 2, 3, 1))

    def conv(x, w, b, silu):
        y = jax.lax.conv_general_dilated(
            x, w, window_strides=(1, 1), padding="SAME",
            dimension_numbers=("NHWC", "HWIO", "NHWC"),
            precision=jax.lax.Precision.HIGHEST)
        y = y + b.reshape(1, 1, 1, -1)
        if silu:
            y = y * jax.nn.sigmoid(y)
        return y

    w, b = params["first"]
    x = conv(x, w, b, False)
    for (w, b) in params["layer"]:
        x = conv(x, w, b, True)
    w, b = params["last"]
    x = conv(x, w, b, False)
    return jnp.transpose(x, (0, 3, 1, 2))


if __name__ == "__main__":
    config = {"nb_channel": 8, "size": 16, "nb_layer": 2}
    key = jax.random.PRNGKey(0)
    k_param, k_x = jax.random.split(key)

    params = init_params(k_param, config)
    # Input matches PyTorch NCHW convention: [batch=2, 3, 16, 16]
    x = jax.random.normal(k_x, (2, 3, config["size"], config["size"]), jnp.float32)

    out = jax.block_until_ready(cnn_forward(params, x, config))
    ref = jax.block_until_ready(cnn_forward_ref(params, x))

    assert out.shape == (2, 3, config["size"], config["size"])
    assert jnp.max(jnp.abs(out - ref)) < 2e-4

    print("KERNEL_OK")
</pallas_src>

<mosaic_0001>
module attributes {stable_mosaic.version = 11 : i64} {
  func.func @_fused_cnn_kernel(%arg0: i32, %arg1: memref<1x16x128xf32, #tpu.memory_space<vmem>>, %arg2: memref<4x3x128x128xf32, #tpu.memory_space<vmem>>, %arg3: memref<4x1x128xf32, #tpu.memory_space<vmem>>, %arg4: memref<1x16x128xf32, #tpu.memory_space<vmem>>) attributes {dimension_semantics = [#tpu.dimension_semantics<parallel>], iteration_bounds = array<i64: 2>, scalar_prefetch = 0 : i64, scratch_operands = 0 : i64, tpu.core_type = #tpu.core_type<tc>, window_params = [{transform_indices = @transform_0, window_bounds = array<i64: 1, 16, 128>}, {pipeline_mode = #tpu.pipeline_mode<synchronous>, transform_indices = @transform_1, window_bounds = array<i64: 4, 3, 128, 128>}, {pipeline_mode = #tpu.pipeline_mode<synchronous>, transform_indices = @transform_2, window_bounds = array<i64: 4, 1, 128>}, {transform_indices = @transform_3, window_bounds = array<i64: 1, 16, 128>}]} {
    %c0 = arith.constant 0 : index
    %c0_0 = arith.constant 0 : index
    %c0_1 = arith.constant 0 : index
    %0 = vector.load %arg1[%c0, %c0_0, %c0_1] : memref<1x16x128xf32, #tpu.memory_space<vmem>>, vector<1x16x128xf32>
    %1 = vector.shape_cast %0 : vector<1x16x128xf32> to vector<16x128xf32>
    %cst = arith.constant 0.000000e+00 : f32
    %2 = vector.broadcast %cst : f32 to vector<1x128xf32>
    %c0_2 = arith.constant 0 : index
    %c0_3 = arith.constant 0 : index
    %c0_4 = arith.constant 0 : index
    %c0_5 = arith.constant 0 : index
    %3 = vector.load %arg2[%c0_2, %c0_3, %c0_4, %c0_5] : memref<4x3x128x128xf32, #tpu.memory_space<vmem>>, vector<1x1x128x128xf32>
    %4 = vector.shape_cast %3 : vector<1x1x128x128xf32> to vector<128x128xf32>
    %cst_6 = arith.constant dense<0.000000e+00> : vector<16x128xf32>
    %5 = tpu.matmul %1, %4, %cst_6 {dimension_numbers = #tpu.dot_dimension_numbers<[1], [0], [0], [1], [0, 0, 1, 1], [], []>} : vector<16x128xf32>, vector<128x128xf32>, vector<16x128xf32> -> vector<16x128xf32>
    %c0_7 = arith.constant 0 : index
    %c1 = arith.constant 1 : index
    %c0_8 = arith.constant 0 : index
    %c0_9 = arith.constant 0 : index
    %6 = vector.load %arg2[%c0_7, %c1, %c0_8, %c0_9] : memref<4x3x128x128xf32, #tpu.memory_space<vmem>>, vector<1x1x128x128xf32>
    %7 = vector.shape_cast %6 : vector<1x1x128x128xf32> to vector<128x128xf32>
    %cst_10 = arith.constant dense<0.000000e+00> : vector<16x128xf32>
    %8 = tpu.matmul %1, %7, %cst_10 {dimension_numbers = #tpu.dot_dimension_numbers<[1], [0], [0], [1], [0, 0, 1, 1], [], []>} : vector<16x128xf32>, vector<128x128xf32>, vector<16x128xf32> -> vector<16x128xf32>
    %c0_11 = arith.constant 0 : index
    %c2 = arith.constant 2 : index
    %c0_12 = arith.constant 0 : index
    %c0_13 = arith.constant 0 : index
    %9 = vector.load %arg2[%c0_11, %c2, %c0_12, %c0_13] : memref<4x3x128x128xf32, #tpu.memory_space<vmem>>, vector<1x1x128x128xf32>
    %10 = vector.shape_cast %9 : vector<1x1x128x128xf32> to vector<128x128xf32>
    %cst_14 = arith.constant dense<0.000000e+00> : vector<16x128xf32>
    %11 = tpu.matmul %1, %10, %cst_14 {dimension_numbers = #tpu.dot_dimension_numbers<[1], [0], [0], [1], [0, 0, 1, 1], [], []>} : vector<16x128xf32>, vector<128x128xf32>, vector<16x128xf32> -> vector<16x128xf32>
    %12 = vector.extract_strided_slice %5 {offsets = [0, 0], sizes = [15, 128], strides = [1, 1]} : vector<16x128xf32> to vector<15x128xf32>
    %13 = tpu.concatenate %2, %12 in 0 : vector<1x128xf32>, vector<15x128xf32> -> vector<16x128xf32>
    %14 = arith.addf %8, %13 : vector<16x128xf32>
    %15 = vector.extract_strided_slice %11 {offsets = [1, 0], sizes = [15, 128], strides = [1, 1]} : vector<16x128xf32> to vector<15x128xf32>
    %16 = tpu.concatenate %15, %2 in 0 : vector<15x128xf32>, vector<1x128xf32> -> vector<16x128xf32>
    %17 = arith.addf %14, %16 : vector<16x128xf32>
    %c0_15 = arith.constant 0 : index
    %c0_16 = arith.constant 0 : index
    %c0_17 = arith.constant 0 : index
    %18 = vector.load %arg3[%c0_15, %c0_16, %c0_17] : memref<4x1x128xf32, #tpu.memory_space<vmem>>, vector<1x1x128xf32>
    %19 = vector.shape_cast %18 : vector<1x1x128xf32> to vector<1x128xf32>
    %20 = vector.broadcast %19 : vector<1x128xf32> to vector<16x128xf32>
    %21 = arith.addf %17, %20 : vector<16x128xf32>
    %c1_18 = arith.constant 1 : index
    %c0_19 = arith.constant 0 : index
    %c0_20 = arith.constant 0 : index
    %c0_21 = arith.constant 0 : index
    %22 = vector.load %arg2[%c1_18, %c0_19, %c0_20, %c0_21] : memref<4x3x128x128xf32, #tpu.memory_space<vmem>>, vector<1x1x128x128xf32>
    %23 = vector.shape_cast %22 : vector<1x1x128x128xf32> to vector<128x128xf32>
    %cst_22 = arith.constant dense<0.000000e+00> : vector<16x128xf32>
    %24 = tpu.matmul %21, %23, %cst_22 {dimension_numbers = #tpu.dot_dimension_numbers<[1], [0], [0], [1], [0, 0, 1, 1], [], []>} : vector<16x128xf32>, vector<128x128xf32>, vector<16x128xf32> -> vector<16x128xf32>
    %c1_23 = arith.constant 1 : index
    %c1_24 = arith.constant 1 : index
    %c0_25 = arith.constant 0 : index
    %c0_26 = arith.constant 0 : index
    %25 = vector.load %arg2[%c1_23, %c1_24, %c0_25, %c0_26] : memref<4x3x128x128xf32, #tpu.memory_space<vmem>>, vector<1x1x128x128xf32>
    %26 = vector.shape_cast %25 : vector<1x1x128x128xf32> to vector<128x128xf32>
    %cst_27 = arith.constant dense<0.000000e+00> : vector<16x128xf32>
    %27 = tpu.matmul %21, %26, %cst_27 {dimension_numbers = #tpu.dot_dimension_numbers<[1], [0], [0], [1], [0, 0, 1, 1], [], []>} : vector<16x128xf32>, vector<128x128xf32>, vector<16x128xf32> -> vector<16x128xf32>
    %c1_28 = arith.constant 1 : index
    %c2_29 = arith.constant 2 : index
    %c0_30 = arith.constant 0 : index
    %c0_31 = arith.constant 0 : index
    %28 = vector.load %arg2[%c1_28, %c2_29, %c0_30, %c0_31] : memref<4x3x128x128xf32, #tpu.memory_space<vmem>>, vector<1x1x128x128xf32>
    %29 = vector.shape_cast %28 : vector<1x1x128x128xf32> to vector<128x128xf32>
    %cst_32 = arith.constant dense<0.000000e+00> : vector<16x128xf32>
    %30 = tpu.matmul %21, %29, %cst_32 {dimension_numbers = #tpu.dot_dimension_numbers<[1], [0], [0], [1], [0, 0, 1, 1], [], []>} : vector<16x128xf32>, vector<128x128xf32>, vector<16x128xf32> -> vector<16x128xf32>
    %31 = vector.extract_strided_slice %24 {offsets = [0, 0], sizes = [15, 128], strides = [1, 1]} : vector<16x128xf32> to vector<15x128xf32>
    %32 = tpu.concatenate %2, %31 in 0 : vector<1x128xf32>, vector<15x128xf32> -> vector<16x128xf32>
    %33 = arith.addf %27, %32 : vector<16x128xf32>
    %34 = vector.extract_strided_slice %30 {offsets = [1, 0], sizes = [15, 128], strides = [1, 1]} : vector<16x128xf32> to vector<15x128xf32>
    %35 = tpu.concatenate %34, %2 in 0 : vector<15x128xf32>, vector<1x128xf32> -> vector<16x128xf32>
    %36 = arith.addf %33, %35 : vector<16x128xf32>
    %c1_33 = arith.constant 1 : index
    %c0_34 = arith.constant 0 : index
    %c0_35 = arith.constant 0 : index
    %37 = vector.load %arg3[%c1_33, %c0_34, %c0_35] : memref<4x1x128xf32, #tpu.memory_space<vmem>>, vector<1x1x128xf32>
    %38 = vector.shape_cast %37 : vector<1x1x128xf32> to vector<1x128xf32>
    %39 = vector.broadcast %38 : vector<1x128xf32> to vector<16x128xf32>
    %40 = arith.addf %36, %39 : vector<16x128xf32>
    %cst_36 = arith.constant 0.000000e+00 : f32
    %41 = vector.broadcast %cst_36 : f32 to vector<16x128xf32>
    %42 = arith.subf %41, %40 : vector<16x128xf32>
    %43 = math.exp %42 : vector<16x128xf32>
    %cst_37 = arith.constant 1.000000e+00 : f32
    %44 = vector.broadcast %cst_37 : f32 to vector<16x128xf32>
    %45 = arith.addf %44, %43 : vector<16x128xf32>
    %46 = tpu.reciprocal %45 : vector<16x128xf32> -> vector<16x128xf32>
    %47 = arith.mulf %40, %46 : vector<16x128xf32>
    %c2_38 = arith.constant 2 : index
    %c0_39 = arith.constant 0 : index
    %c0_40 = arith.constant 0 : index
    %c0_41 = arith.constant 0 : index
    %48 = vector.load %arg2[%c2_38, %c0_39, %c0_40, %c0_41] : memref<4x3x128x128xf32, #tpu.memory_space<vmem>>, vector<1x1x128x128xf32>
    %49 = vector.shape_cast %48 : vector<1x1x128x128xf32> to vector<128x128xf32>
    %cst_42 = arith.constant dense<0.000000e+00> : vector<16x128xf32>
    %50 = tpu.matmul %47, %49, %cst_42 {dimension_numbers = #tpu.dot_dimension_numbers<[1], [0], [0], [1], [0, 0, 1, 1], [], []>} : vector<16x128xf32>, vector<128x128xf32>, vector<16x128xf32> -> vector<16x128xf32>
    %c2_43 = arith.constant 2 : index
    %c1_44 = arith.constant 1 : index
    %c0_45 = arith.constant 0 : index
    %c0_46 = arith.constant 0 : index
    %51 = vector.load %arg2[%c2_43, %c1_44, %c0_45, %c0_46] : memref<4x3x128x128xf32, #tpu.memory_space<vmem>>, vector<1x1x128x128xf32>
    %52 = vector.shape_cast %51 : vector<1x1x128x128xf32> to vector<128x128xf32>
    %cst_47 = arith.constant dense<0.000000e+00> : vector<16x128xf32>
    %53 = tpu.matmul %47, %52, %cst_47 {dimension_numbers = #tpu.dot_dimension_numbers<[1], [0], [0], [1], [0, 0, 1, 1], [], []>} : vector<16x128xf32>, vector<128x128xf32>, vector<16x128xf32> -> vector<16x128xf32>
    %c2_48 = arith.constant 2 : index
    %c2_49 = arith.constant 2 : index
    %c0_50 = arith.constant 0 : index
    %c0_51 = arith.constant 0 : index
    %54 = vector.load %arg2[%c2_48, %c2_49, %c0_50, %c0_51] : memref<4x3x128x128xf32, #tpu.memory_space<vmem>>, vector<1x1x128x128xf32>
    %55 = vector.shape_cast %54 : vector<1x1x128x128xf32> to vector<128x128xf32>
    %cst_52 = arith.constant dense<0.000000e+00> : vector<16x128xf32>
    %56 = tpu.matmul %47, %55, %cst_52 {dimension_numbers = #tpu.dot_dimension_numbers<[1], [0], [0], [1], [0, 0, 1, 1], [], []>} : vector<16x128xf32>, vector<128x128xf32>, vector<16x128xf32> -> vector<16x128xf32>
    %57 = vector.extract_strided_slice %50 {offsets = [0, 0], sizes = [15, 128], strides = [1, 1]} : vector<16x128xf32> to vector<15x128xf32>
    %58 = tpu.concatenate %2, %57 in 0 : vector<1x128xf32>, vector<15x128xf32> -> vector<16x128xf32>
    %59 = arith.addf %53, %58 : vector<16x128xf32>
    %60 = vector.extract_strided_slice %56 {offsets = [1, 0], sizes = [15, 128], strides = [1, 1]} : vector<16x128xf32> to vector<15x128xf32>
    %61 = tpu.concatenate %60, %2 in 0 : vector<15x128xf32>, vector<1x128xf32> -> vector<16x128xf32>
    %62 = arith.addf %59, %61 : vector<16x128xf32>
    %c2_53 = arith.constant 2 : index
    %c0_54 = arith.constant 0 : index
    %c0_55 = arith.constant 0 : index
    %63 = vector.load %arg3[%c2_53, %c0_54, %c0_55] : memref<4x1x128xf32, #tpu.memory_space<vmem>>, vector<1x1x128xf32>
    %64 = vector.shape_cast %63 : vector<1x1x128xf32> to vector<1x128xf32>
    %65 = vector.broadcast %64 : vector<1x128xf32> to vector<16x128xf32>
    %66 = arith.addf %62, %65 : vector<16x128xf32>
    %cst_56 = arith.constant 0.000000e+00 : f32
    %67 = vector.broadcast %cst_56 : f32 to vector<16x128xf32>
    %68 = arith.subf %67, %66 : vector<16x128xf32>
    %69 = math.exp %68 : vector<16x128xf32>
    %cst_57 = arith.constant 1.000000e+00 : f32
    %70 = vector.broadcast %cst_57 : f32 to vector<16x128xf32>
    %71 = arith.addf %70, %69 : vector<16x128xf32>
    %72 = tpu.reciprocal %71 : vector<16x128xf32> -> vector<16x128xf32>
    %73 = arith.mulf %66, %72 : vector<16x128xf32>
    %c3 = arith.constant 3 : index
    %c0_58 = arith.constant 0 : index
    %c0_59 = arith.constant 0 : index
    %c0_60 = arith.constant 0 : index
    %74 = vector.load %arg2[%c3, %c0_58, %c0_59, %c0_60] : memref<4x3x128x128xf32, #tpu.memory_space<vmem>>, vector<1x1x128x128xf32>
    %75 = vector.shape_cast %74 : vector<1x1x128x128xf32> to vector<128x128xf32>
    %cst_61 = arith.constant dense<0.000000e+00> : vector<16x128xf32>
    %76 = tpu.matmul %73, %75, %cst_61 {dimension_numbers = #tpu.dot_dimension_numbers<[1], [0], [0], [1], [0, 0, 1, 1], [], []>} : vector<16x128xf32>, vector<128x128xf32>, vector<16x128xf32> -> vector<16x128xf32>
    %c3_62 = arith.constant 3 : index
    %c1_63 = arith.constant 1 : index
    %c0_64 = arith.constant 0 : index
    %c0_65 = arith.constant 0 : index
    %77 = vector.load %arg2[%c3_62, %c1_63, %c0_64, %c0_65] : memref<4x3x128x128xf32, #tpu.memory_space<vmem>>, vector<1x1x128x128xf32>
    %78 = vector.shape_cast %77 : vector<1x1x128x128xf32> to vector<128x128xf32>
    %cst_66 = arith.constant dense<0.000000e+00> : vector<16x128xf32>
    %79 = tpu.matmul %73, %78, %cst_66 {dimension_numbers = #tpu.dot_dimension_numbers<[1], [0], [0], [1], [0, 0, 1, 1], [], []>} : vector<16x128xf32>, vector<128x128xf32>, vector<16x128xf32> -> vector<16x128xf32>
    %c3_67 = arith.constant 3 : index
    %c2_68 = arith.constant 2 : index
    %c0_69 = arith.constant 0 : index
    %c0_70 = arith.constant 0 : index
    %80 = vector.load %arg2[%c3_67, %c2_68, %c0_69, %c0_70] : memref<4x3x128x128xf32, #tpu.memory_space<vmem>>, vector<1x1x128x128xf32>
    %81 = vector.shape_cast %80 : vector<1x1x128x128xf32> to vector<128x128xf32>
    %cst_71 = arith.constant dense<0.000000e+00> : vector<16x128xf32>
    %82 = tpu.matmul %73, %81, %cst_71 {dimension_numbers = #tpu.dot_dimension_numbers<[1], [0], [0], [1], [0, 0, 1, 1], [], []>} : vector<16x128xf32>, vector<128x128xf32>, vector<16x128xf32> -> vector<16x128xf32>
    %83 = vector.extract_strided_slice %76 {offsets = [0, 0], sizes = [15, 128], strides = [1, 1]} : vector<16x128xf32> to vector<15x128xf32>
    %84 = tpu.concatenate %2, %83 in 0 : vector<1x128xf32>, vector<15x128xf32> -> vector<16x128xf32>
    %85 = arith.addf %79, %84 : vector<16x128xf32>
    %86 = vector.extract_strided_slice %82 {offsets = [1, 0], sizes = [15, 128], strides = [1, 1]} : vector<16x128xf32> to vector<15x128xf32>
    %87 = tpu.concatenate %86, %2 in 0 : vector<15x128xf32>, vector<1x128xf32> -> vector<16x128xf32>
    %88 = arith.addf %85, %87 : vector<16x128xf32>
    %c3_72 = arith.constant 3 : index
    %c0_73 = arith.constant 0 : index
    %c0_74 = arith.constant 0 : index
    %89 = vector.load %arg3[%c3_72, %c0_73, %c0_74] : memref<4x1x128xf32, #tpu.memory_space<vmem>>, vector<1x1x128xf32>
    %90 = vector.shape_cast %89 : vector<1x1x128xf32> to vector<1x128xf32>
    %91 = vector.broadcast %90 : vector<1x128xf32> to vector<16x128xf32>
    %92 = arith.addf %88, %91 : vector<16x128xf32>
    %c0_75 = arith.constant 0 : index
    %c0_76 = arith.constant 0 : index
    %c0_77 = arith.constant 0 : index
    %93 = vector.load %arg4[%c0_75, %c0_76, %c0_77] : memref<1x16x128xf32, #tpu.memory_space<vmem>>, vector<1x16x128xf32>
    %94 = vector.shape_cast %93 : vector<1x16x128xf32> to vector<16x128xf32>
    %95 = vector.shape_cast %92 : vector<16x128xf32> to vector<1x16x128xf32>
    tpu.vector_store %arg4[%c0_75, %c0_76, %c0_77], %95 {strides = array<i32>} : memref<1x16x128xf32, #tpu.memory_space<vmem>>, vector<1x16x128xf32>,
    return
  }
  func.func @transform_0(%arg0: i32) -> (i32, i32, i32) {
    %c0_i32 = arith.constant 0 : i32
    %c0_i32_0 = arith.constant 0 : i32
    %c0_i32_1 = arith.constant 0 : i32
    return %arg0, %c0_i32, %c0_i32_0 : i32, i32, i32
  }
  func.func @transform_1(%arg0: i32) -> (i32, i32, i32, i32) {
    %c0_i32 = arith.constant 0 : i32
    %c0_i32_0 = arith.constant 0 : i32
    %c0_i32_1 = arith.constant 0 : i32
    %c0_i32_2 = arith.constant 0 : i32
    %c0_i32_3 = arith.constant 0 : i32
    return %c0_i32, %c0_i32_0, %c0_i32_1, %c0_i32_2 : i32, i32, i32, i32
  }
  func.func @transform_2(%arg0: i32) -> (i32, i32, i32) {
    %c0_i32 = arith.constant 0 : i32
    %c0_i32_0 = arith.constant 0 : i32
    %c0_i32_1 = arith.constant 0 : i32
    %c0_i32_2 = arith.constant 0 : i32
    return %c0_i32, %c0_i32_0, %c0_i32_1 : i32, i32, i32
  }
  func.func @transform_3(%arg0: i32) -> (i32, i32, i32) {
    %c0_i32 = arith.constant 0 : i32
    %c0_i32_0 = arith.constant 0 : i32
    %c0_i32_1 = arith.constant 0 : i32
    return %arg0, %c0_i32, %c0_i32_0 : i32, i32, i32
  }
}

</mosaic_0001>

<llo_original>
// kernel: tpu_custom_call.1
$region0: #{tpu_custom_call.1}
  #allocation0 [shape = 'u32[]', space=smem, size = 0x4, offset = 0x4, fixed_abs, tag = 'smem constant byte address 0x4 - core index']
  #allocation1 [shape = 'u32[72,128]{1,0:T(1,128)}', space=vmem, size = 0x9000, scoped, tag = 'internal scratch']
  %s0 = inlined_call_operand.hbm [shape: f32[2,16,128], index: 0, kind: input, shape index: {}]
  %s1 = inlined_call_operand.hbm [shape: f32[4,3,128,128], index: 1, kind: input, shape index: {}]
  %s2 = inlined_call_operand.hbm [shape: f32[4,1,128], index: 2, kind: input, shape index: {}]
  %s3 = inlined_call_operand.hbm [shape: f32[2,16,128], index: 3, kind: output, shape index: {}]
  %s4 = sld [smem:[#allocation0]]
  $region57: #{tpu_custom_call.1} parent=0
    _
  %s6 = ssub.s32 1, %s4
  %s7 = scalar_select 0, %s6, %s4
  $region1: #{tpu_custom_call.1} parent=0
    #allocation2 [shape = 'u8[16384]{0}', space=vmem, size = 0x4000, scoped, tag = 'input window, operand 0']
    #allocation3 [shape = 's32[2]{0}', space=sflag, size = 0x8, scoped, tag = 'scoped memory for tpu_custom_call.1']
    #allocation4 [shape = 's32[2]{0}', space=sflag, size = 0x8, scoped, tag = 'scoped memory for tpu_custom_call.1']
    #allocation5 [shape = 'u8[786432]{0}', space=vmem, size = 0xc0000, scoped, tag = 'input window, operand 1, single buffered']
    #allocation6 [shape = 's32[1]{0}', space=sflag, size = 0x4, scoped, tag = 'scoped memory for tpu_custom_call.1']
    #allocation7 [shape = 'u8[2048]{0}', space=vmem, size = 0x800, scoped, tag = 'input window, operand 2, single buffered']
    #allocation8 [shape = 'u8[16384]{0}', space=vmem, size = 0x4000, scoped, tag = 'output window, operand 0']
    %8 = vsyncpa [#allocation3], 0
    %s9 = scalar_lea.sflag [#allocation3], 1
    %10 = vsyncpa %s9, 0
    %11 = vsyncpa [#allocation6], 0
    %12 = vsyncpa [#allocation4], 0
    %s13 = scalar_lea.sflag [#allocation4], 1
    %14 = vsyncpa %s13, 0
    loop: start=0, step=1, limit=4
    $region2: #{tpu_custom_call.1} parent=1 // loop_pre_header
      _
    $region3: #{tpu_custom_call.1} parent=1 // loop_header
      %s16 = sphi 0, %s20
      %p17 = scmp.ge.s32.totalorder %s16, 4
      %s26 = sphi 0, %s28
      %s29 = sphi 0, %s26
      %s30 = sphi 0, %s29
      %s46 = sphi 0, %s30
      %s50 = sphi 0, %s50
      %s52 = sphi 0, %s50
      %s53 = sphi 0, %s52
      %s67 = sphi 0, %s53
      %s71 = sphi 0, %s71
      %s73 = sphi 0, %s71
      %s74 = sphi 0, %s73
      %s88 = sphi 0, %s74
      %s94 = sphi 0, %s96
      %s97 = sphi 0, %s94
      %s98 = sphi 0, %s97
      %s114 = sphi 0, %s98
    $region4: #{tpu_custom_call.1} parent=1 // loop_header_branch
      %19 = sbr.rel (%p17) target = $region8
    $region5: #{tpu_custom_call.1} parent=1 // loop_body
      %s21 = ssub.s32 %s16, 1
      %s22 = ssub.s32 %s16, 2
      %s23 = sadd.s32 %s16, 1
      %s24 = ssub.s32 %s16, %s23
      %p25 = scmp.eq.s32.totalorder %s24, 0
      %s27 = sadd.s32 %s26, 1
      %s28 = scalar_select %p25, %s26, %s27
      %p31 = pneg %p25
      %p32 = scmp.eq.s32.totalorder %s16, 1
      %p33 = por %p31, %p32
      %p34 = scmp.ne.s32.totalorder %s26, %s29
      %p35 = scmp.eq.s32.totalorder %s16, 0
      %p36 = por %p34, %p35
      %p37 = scmp.ne.s32.totalorder %s26, %s29
      %p38 = scmp.eq.s32.totalorder %s21, 1
      %p39 = por %p37, %p38
      %p40 = scmp.ne.s32.totalorder %s29, %s30
      %p41 = scmp.eq.s32.totalorder %s21, 0
      %p42 = por %p40, %p41
      %p43 = scmp.ne.s32.totalorder %s29, %s30
      %p44 = scmp.eq.s32.totalorder %s22, 1
      %p45 = por %p43, %p44
      %p47 = scmp.ne.s32.totalorder %s30, %s46
      %p48 = scmp.eq.s32.totalorder %s22, 0
      %p49 = por %p47, %p48
      %s51 = sadd.s32 %s50, 1
      %p54 = scmp.eq.s32.totalorder %s16, 1
      %p55 = scmp.ne.s32.totalorder %s50, %s52
      %p56 = scmp.eq.s32.totalorder %s16, 0
      %p57 = por %p55, %p56
      %p58 = scmp.ne.s32.totalorder %s50, %s52
      %p59 = scmp.eq.s32.totalorder %s21, 1
      %p60 = por %p58, %p59
      %p61 = scmp.ne.s32.totalorder %s52, %s53
      %p62 = scmp.eq.s32.totalorder %s21, 0
      %p63 = por %p61, %p62
      %p64 = scmp.ne.s32.totalorder %s52, %s53
      %p65 = scmp.eq.s32.totalorder %s22, 1
      %p66 = por %p64, %p65
      %p68 = scmp.ne.s32.totalorder %s53, %s67
      %p69 = scmp.eq.s32.totalorder %s22, 0
      %p70 = por %p68, %p69
      %s72 = sadd.s32 %s71, 1
      %p75 = scmp.eq.s32.totalorder %s16, 1
      %p76 = scmp.ne.s32.totalorder %s71, %s73
      %p77 = scmp.eq.s32.totalorder %s16, 0
      %p78 = por %p76, %p77
      %p79 = scmp.ne.s32.totalorder %s71, %s73
      %p80 = scmp.eq.s32.totalorder %s21, 1
      %p81 = por %p79, %p80
      %p82 = scmp.ne.s32.totalorder %s73, %s74
      %p83 = scmp.eq.s32.totalorder %s21, 0
      %p84 = por %p82, %p83
      %p85 = scmp.ne.s32.totalorder %s73, %s74
      %p86 = scmp.eq.s32.totalorder %s22, 1
      %p87 = por %p85, %p86
      %p89 = scmp.ne.s32.totalorder %s74, %s88
      %p90 = scmp.eq.s32.totalorder %s22, 0
      %p91 = por %p89, %p90
      %s92 = ssub.s32 %s16, %s23
      %p93 = scmp.eq.s32.totalorder %s92, 0
      %s95 = sadd.s32 %s94, 1
      %s96 = scalar_select %p93, %s94, %s95
      %p99 = pneg %p93
      %p100 = scmp.eq.s32.totalorder %s16, 1
      %p101 = por %p99, %p100
      %p102 = scmp.ne.s32.totalorder %s94, %s97
      %p103 = scmp.eq.s32.totalorder %s16, 0
      %p104 = por %p102, %p103
      %p105 = scmp.ne.s32.totalorder %s94, %s97
      %p106 = scmp.eq.s32.totalorder %s21, 1
      %p107 = por %p105, %p106
      %p108 = scmp.ne.s32.totalorder %s97, %s98
      %p109 = scmp.eq.s32.totalorder %s21, 0
      %p110 = por %p108, %p109
      %p111 = scmp.ne.s32.totalorder %s97, %s98
      %p112 = scmp.eq.s32.totalorder %s22, 1
      %p113 = por %p111, %p112
      %p115 = scmp.ne.s32.totalorder %s98, %s114
      %p116 = scmp.eq.s32.totalorder %s22, 0
      %p117 = por %p115, %p116
      %p118 = scmp.le.s32.totalorder 1, %s16
      %p119 = scmp.lt.s32.totalorder %s16, 3
      %p120 = pnand %p118, %p119
      %p121 = pneg %p120
      // Predicated region
      $region9: #{tpu_custom_call.1} parent=5 // pred_check
        _
      $region10: #{tpu_custom_call.1} parent=5 // pred_check_branch
        %123 = sbr.rel (%p120) target = $region12
      $region11: #{tpu_custom_call.1} parent=5 // pred_region
        %s124 = ssub.s32 %s16, 1
        // Predicated region
        $region13: #{tpu_custom_call.1} parent=11 // pred_check
          %p125 = pneg %p63
        $region14: #{tpu_custom_call.1} parent=11 // pred_check_branch
          %127 = sbr.rel (%p125) target = $region16
        $region15: #{tpu_custom_call.1} parent=11 // pred_region
          %129 = vsyncadd [#allocation6], 0
          %s130 = sshll.u32 %s1, 4
          %s131 = int_to_ptr.hbm [resolvable:$true] %s130
          %s132 = sshll.u32 [#allocation5], 4
          %s133 = int_to_ptr.vmem [resolvable:$true] %s132
          %138 = dma.hbm_to_vmem [thread:$0]  %s131, 24576, %s133, [#allocation6], 128, 128, 8
        $region16: #{tpu_custom_call.1} parent=11 // pred_fallthru
          _
        // Predicated region
        $region17: #{tpu_custom_call.1} parent=11 // pred_check
          %p139 = pneg %p84
        $region18: #{tpu_custom_call.1} parent=11 // pred_check_branch
          %141 = sbr.rel (%p139) target = $region20
        $region19: #{tpu_custom_call.1} parent=11 // pred_region
          %143 = vsyncadd [#allocation6], 0
          %s144 = sshll.u32 %s2, 4
          %s145 = int_to_ptr.hbm [resolvable:$true] %s144
          %s146 = sshll.u32 [#allocation7], 4
          %s147 = int_to_ptr.vmem [resolvable:$true] %s146
          %152 = dma.hbm_to_vmem [thread:$0]  %s145, 64, %s147, [#allocation6], 16, 16, 1
        $region20: #{tpu_custom_call.1} parent=11 // pred_fallthru
          _
      $region12: #{tpu_custom_call.1} parent=5 // pred_fallthru
        _
      %p153 = scmp.lt.s32.totalorder %s16, 2
      // Predicated region
      $region21: #{tpu_custom_call.1} parent=5 // pred_check
        %p154 = pneg %p153
      $region22: #{tpu_custom_call.1} parent=5 // pred_check_branch
        %156 = sbr.rel (%p154) target = $region24
      $region23: #{tpu_custom_call.1} parent=5 // pred_region
        // Predicated region
        $region25: #{tpu_custom_call.1} parent=23 // pred_check
          %p157 = pneg %p36
        $region26: #{tpu_custom_call.1} parent=23 // pred_check_branch
          %159 = sbr.rel (%p157) target = $region28
        $region27: #{tpu_custom_call.1} parent=23 // pred_region
          %s160 = sand.u32 %s26, 1
          %s161 = scalar_lea.sflag [#allocation3], %s160
          %s162 = sand.u32 %s26, 1
          %s163 = smul.addr %s162, 16
          %s164 = scalar_lea.vmem [#allocation2], %s163
          %166 = vsyncadd %s161, 0
          %s167 = smul.addr %s16, 2
          %s168 = smul.addr %s167, 8
          %s169 = scalar_lea.hbm %s0, %s168
          %s170 = sshll.u32 %s169, 4
          %s171 = int_to_ptr.hbm [resolvable:$true] %s170
          %s172 = sshll.u32 %s164, 4
          %s173 = int_to_ptr.vmem [resolvable:$true] %s172
          %178 = dma.hbm_to_vmem [thread:$0]  %s171, 256, %s173, %s161, 128, 128, 8
        $region28: #{tpu_custom_call.1} parent=23 // pred_fallthru
          _
      $region24: #{tpu_custom_call.1} parent=5 // pred_fallthru
        _
      %p179 = scmp.le.s32.totalorder 1, %s16
      %p180 = scmp.lt.s32.totalorder %s16, 3
      %p181 = pnand %p179, %p180
      %p182 = pneg %p181
      // Predicated region
      $region29: #{tpu_custom_call.1} parent=5 // pred_check
        _
      $region30: #{tpu_custom_call.1} parent=5 // pred_check_branch
        %184 = sbr.rel (%p181) target = $region32
      $region31: #{tpu_custom_call.1} parent=5 // pred_region
        %s185 = ssub.s32 %s16, 1
        %s186 = sand.u32 %s29, 1
        %s187 = scalar_lea.sflag [#allocation3], %s186
        %s188 = sand.u32 %s29, 1
        %s189 = smul.addr %s188, 16
        %s190 = scalar_lea.vmem [#allocation2], %s189
        // Predicated region
        $region33: #{tpu_custom_call.1} parent=31 // pred_check
          %p191 = pneg %p42
        $region34: #{tpu_custom_call.1} parent=31 // pred_check_branch
          %193 = sbr.rel (%p191) target = $region36
        $region35: #{tpu_custom_call.1} parent=31 // pred_region
          %195 = dma.done %s187, 256
        $region36: #{tpu_custom_call.1} parent=31 // pred_fallthru
          _
        // Predicated region
        $region37: #{tpu_custom_call.1} parent=31 // pred_check
          %p196 = pneg %p63
        $region38: #{tpu_custom_call.1} parent=31 // pred_check_branch
          %198 = sbr.rel (%p196) target = $region40
        $region39: #{tpu_custom_call.1} parent=31 // pred_region
          %200 = dma.done [#allocation6], 24576
        $region40: #{tpu_custom_call.1} parent=31 // pred_fallthru
          _
        // Predicated region
        $region41: #{tpu_custom_call.1} parent=31 // pred_check
          %p201 = pneg %p84
        $region42: #{tpu_custom_call.1} parent=31 // pred_check_branch
          %203 = sbr.rel (%p201) target = $region44
        $region43: #{tpu_custom_call.1} parent=31 // pred_region
          %205 = dma.done [#allocation6], 64
        $region44: #{tpu_custom_call.1} parent=31 // pred_fallthru
          _
        %s206 = sand.u32 %s29, 1
        %s207 = scalar_lea.sflag [#allocation3], %s206
        %s208 = sand.u32 %s29, 1
        %s209 = smul.addr %s208, 16
        %s210 = scalar_lea.vmem [#allocation2], %s209
        %p211 = pneg %p42
        %p212 = pneg %p39
        %p213 = pneg %p63
        %p214 = pneg %p60
        %p215 = pneg %p84
        %p216 = pneg %p81
        %p217 = pneg %p110
        %p218 = pneg %p107
        %s219 = sand.u32 %s97, 1
        %s220 = scalar_lea.sflag [#allocation4], %s219
        %s221 = sand.u32 %s97, 1
        %s222 = smul.addr %s221, 16
        %s223 = scalar_lea.vmem [#allocation8], %s222
        %v224 = vld [vmem:[%s190] sm:$0xff]
        %v225 = vld [vmem:[%s190 + $0x8] sm:$0xff]
        %v226 = vld [vmem:[#allocation5] sm:$0xff]
        %v227 = vld [vmem:[#allocation5 + $0x8] sm:$0xff]
        %v228 = vld [vmem:[#allocation5 + $0x10] sm:$0xff]
        %v229 = vld [vmem:[#allocation5 + $0x18] sm:$0xff]
        %v230 = vld [vmem:[#allocation5 + $0x20] sm:$0xff]
        %v231 = vld [vmem:[#allocation5 + $0x28] sm:$0xff]
        %v232 = vld [vmem:[#allocation5 + $0x30] sm:$0xff]
        %v233 = vld [vmem:[#allocation5 + $0x38] sm:$0xff]
        %v234 = vld [vmem:[#allocation5 + $0x40] sm:$0xff]
        %v235 = vld [vmem:[#allocation5 + $0x48] sm:$0xff]
        %v236 = vld [vmem:[#allocation5 + $0x50] sm:$0xff]
        %v237 = vld [vmem:[#allocation5 + $0x58] sm:$0xff]
        %v238 = vld [vmem:[#allocation5 + $0x60] sm:$0xff]
        %v239 = vld [vmem:[#allocation5 + $0x68] sm:$0xff]
        %v240 = vld [vmem:[#allocation5 + $0x70] sm:$0xff]
        %v241 = vld [vmem:[#allocation5 + $0x78] sm:$0xff]
        %242 = vmatpush.msra.mxu0 %v241
        %243 = vmatpush.msra.mxu0 %v240
        %244 = vmatpush.msra.mxu0 %v239
        %245 = vmatpush.msra.mxu0 %v238
        %246 = vmatpush.msra.mxu0 %v237
        %247 = vmatpush.msra.mxu0 %v236
        %248 = vmatpush.msra.mxu0 %v235
        %249 = vmatpush.msra.mxu0 %v234
        %250 = vmatpush.msra.mxu0 %v233
        %251 = vmatpush.msra.mxu0 %v232
        %252 = vmatpush.msra.mxu0 %v231
        %253 = vmatpush.msra.mxu0 %v230
        %254 = vmatpush.msra.mxu0 %v229
        %255 = vmatpush.msra.mxu0 %v228
        %256 = vmatpush.msra.mxu0 %v227
        %257 = vmatpush.msra.mxu0 %v226
        %258 = vmatmul.f32.gmra.mxu0 %v224
        %v259 = vpop.f32.mrf.mxu0
        %v260 = vadd.f32 0.0, %v259
        %261 = vmatmul.f32.gmra.mxu0 %v225
        %v262 = vpop.f32.mrf.mxu0
        %v263 = vadd.f32 0.0, %v262
        %264 = vdwg.mxu0
        %s265 = scalar_lea.vmem [#allocation5], 128
        %v266 = vld [vmem:[%s265] sm:$0xff]
        %v267 = vld [vmem:[%s265 + $0x8] sm:$0xff]
        %v268 = vld [vmem:[%s265 + $0x10] sm:$0xff]
        %v269 = vld [vmem:[%s265 + $0x18] sm:$0xff]
        %v270 = vld [vmem:[%s265 + $0x20] sm:$0xff]
        %v271 = vld [vmem:[%s265 + $0x28] sm:$0xff]
        %v272 = vld [vmem:[%s265 + $0x30] sm:$0xff]
        %v273 = vld [vmem:[%s265 + $0x38] sm:$0xff]
        %v274 = vld [vmem:[%s265 + $0x40] sm:$0xff]
        %v275 = vld [vmem:[%s265 + $0x48] sm:$0xff]
        %v276 = vld [vmem:[%s265 + $0x50] sm:$0xff]
        %v277 = vld [vmem:[%s265 + $0x58] sm:$0xff]
        %v278 = vld [vmem:[%s265 + $0x60] sm:$0xff]
        %v279 = vld [vmem:[%s265 + $0x68] sm:$0xff]
        %v280 = vld [vmem:[%s265 + $0x70] sm:$0xff]
        %v281 = vld [vmem:[%s265 + $0x78] sm:$0xff]
        %s282 = scalar_lea.vmem [#allocation5], 256
        %v283 = vld [vmem:[%s282] sm:$0xff]
        %v284 = vld [vmem:[%s282 + $0x8] sm:$0xff]
        %v285 = vld [vmem:[%s282 + $0x10] sm:$0xff]
        %v286 = vld [vmem:[%s282 + $0x18] sm:$0xff]
        %v287 = vld [vmem:[%s282 + $0x20] sm:$0xff]
        %v288 = vld [vmem:[%s282 + $0x28] sm:$0xff]
        %v289 = vld [vmem:[%s282 + $0x30] sm:$0xff]
        %v290 = vld [vmem:[%s282 + $0x38] sm:$0xff]
        %v291 = vld [vmem:[%s282 + $0x40] sm:$0xff]
        %v292 = vld [vmem:[%s282 + $0x48] sm:$0xff]
        %v293 = vld [vmem:[%s282 + $0x50] sm:$0xff]
        %v294 = vld [vmem:[%s282 + $0x58] sm:$0xff]
        %v295 = vld [vmem:[%s282 + $0x60] sm:$0xff]
        %v296 = vld [vmem:[%s282 + $0x68] sm:$0xff]
        %v297 = vld [vmem:[%s282 + $0x70] sm:$0xff]
        %v298 = vld [vmem:[%s282 + $0x78] sm:$0xff]
        %299 = vmatpush.msra.mxu0 %v298
        %300 = vmatpush.msra.mxu0 %v297
        %301 = vmatpush.msra.mxu0 %v296
        %302 = vmatpush.msra.mxu0 %v295
        %303 = vmatpush.msra.mxu0 %v294
        %304 = vmatpush.msra.mxu0 %v293
        %305 = vmatpush.msra.mxu0 %v292
        %306 = vmatpush.msra.mxu0 %v291
        %307 = vmatpush.msra.mxu0 %v290
        %308 = vmatpush.msra.mxu0 %v289
        %309 = vmatpush.msra.mxu0 %v288
        %310 = vmatpush.msra.mxu0 %v287
        %311 = vmatpush.msra.mxu0 %v286
        %312 = vmatpush.msra.mxu0 %v285
        %313 = vmatpush.msra.mxu0 %v284
        %314 = vmatpush.msra.mxu0 %v283
        %315 = vmatmul.f32.gmra.mxu0 %v224
        %v316 = vpop.f32.mrf.mxu0
        %v317 = vadd.f32 0.0, %v316
        %318 = vmatmul.f32.gmra.mxu0 %v225
        %v319 = vpop.f32.mrf.mxu0
        %v320 = vadd.f32 0.0, %v319
        %321 = vdwg.mxu0
        %vm324 = vcmask 1040384
        %v325 = vrot.slane %v260, 7
        %v326 = vrot.slane %v263, 7
        %v327 = vsel %vm324, %v325, %v326
        %v330 = vsel %vm324, 0.0, %v325
        %331 = vmatpush.msra.mxu0 %v281
        %332 = vmatpush.msra.mxu0 %v280
        %333 = vmatpush.msra.mxu0 %v279
        %334 = vmatpush.msra.mxu0 %v278
        %335 = vmatpush.msra.mxu0 %v277
        %336 = vmatpush.msra.mxu0 %v276
        %337 = vmatpush.msra.mxu0 %v275
        %338 = vmatpush.msra.mxu0 %v274
        %339 = vmatpush.msra.mxu0 %v273
        %340 = vmatpush.msra.mxu0 %v272
        %341 = vmatpush.msra.mxu0 %v271
        %342 = vmatpush.msra.mxu0 %v270
        %343 = vmatpush.msra.mxu0 %v269
        %344 = vmatpush.msra.mxu0 %v268
        %345 = vmatpush.msra.mxu0 %v267
        %346 = vmatpush.msra.mxu0 %v266
        %347 = vmatmul.f32.gmra.mxu0 %v224
        %v348 = vpop.f32.mrf.mxu0
        %v349 = vadd.f32 %v330, %v348
        %350 = vmatmul.f32.gmra.mxu0 %v225
        %v351 = vpop.f32.mrf.mxu0
        %v352 = vadd.f32 %v327, %v351
        %353 = vdwg.mxu0
        %vm356 = vcmask 1046528
        %v357 = vrot.slane %v317, 1
        %v358 = vrot.slane %v320, 1
        %v359 = vsel %vm356, %v357, %v358
        %v362 = vsel %vm356, %v358, 0.0
        %v363 = vadd.f32 %v349, %v359
        %v364 = vadd.f32 %v352, %v362
        %v365 = vld [vmem:[#allocation7] sm:$0x1]
        %v367 = vperm.slane %v365, 0
        %v369 = vadd.f32 %v363, %v367
        %v370 = vadd.f32 %v364, %v367
        %s371 = scalar_lea.vmem [#allocation5], 384
        %v372 = vld [vmem:[%s371] sm:$0xff]
        %v373 = vld [vmem:[%s371 + $0x8] sm:$0xff]
        %v374 = vld [vmem:[%s371 + $0x10] sm:$0xff]
        %v375 = vld [vmem:[%s371 + $0x18] sm:$0xff]
        %v376 = vld [vmem:[%s371 + $0x20] sm:$0xff]
        %v377 = vld [vmem:[%s371 + $0x28] sm:$0xff]
        %v378 = vld [vmem:[%s371 + $0x30] sm:$0xff]
        %v379 = vld [vmem:[%s371 + $0x38] sm:$0xff]
        %v380 = vld [vmem:[%s371 + $0x40] sm:$0xff]
        %v381 = vld [vmem:[%s371 + $0x48] sm:$0xff]
        %v382 = vld [vmem:[%s371 + $0x50] sm:$0xff]
        %v383 = vld [vmem:[%s371 + $0x58] sm:$0xff]
        %v384 = vld [vmem:[%s371 + $0x60] sm:$0xff]
        %v385 = vld [vmem:[%s371 + $0x68] sm:$0xff]
        %v386 = vld [vmem:[%s371 + $0x70] sm:$0xff]
        %v387 = vld [vmem:[%s371 + $0x78] sm:$0xff]
        %388 = vmatpush.msra.mxu0 %v387
        %389 = vmatpush.msra.mxu0 %v386
        %390 = vmatpush.msra.mxu0 %v385
        %391 = vmatpush.msra.mxu0 %v384
        %392 = vmatpush.msra.mxu0 %v383
        %393 = vmatpush.msra.mxu0 %v382
        %394 = vmatpush.msra.mxu0 %v381
        %395 = vmatpush.msra.mxu0 %v380
        %396 = vmatpush.msra.mxu0 %v379
        %397 = vmatpush.msra.mxu0 %v378
        %398 = vmatpush.msra.mxu0 %v377
        %399 = vmatpush.msra.mxu0 %v376
        %400 = vmatpush.msra.mxu0 %v375
        %401 = vmatpush.msra.mxu0 %v374
        %402 = vmatpush.msra.mxu0 %v373
        %403 = vmatpush.msra.mxu0 %v372
        %404 = vmatmul.f32.gmra.mxu0 %v369
        %v405 = vpop.f32.mrf.mxu0
        %v406 = vadd.f32 0.0, %v405
        %407 = vmatmul.f32.gmra.mxu0 %v370
        %v408 = vpop.f32.mrf.mxu0
        %v409 = vadd.f32 0.0, %v408
        %410 = vdwg.mxu0
        %s411 = scalar_lea.vmem [#allocation5], 512
        %v412 = vld [vmem:[%s411] sm:$0xff]
        %v413 = vld [vmem:[%s411 + $0x8] sm:$0xff]
        %v414 = vld [vmem:[%s411 + $0x10] sm:$0xff]
        %v415 = vld [vmem:[%s411 + $0x18] sm:$0xff]
        %v416 = vld [vmem:[%s411 + $0x20] sm:$0xff]
        %v417 = vld [vmem:[%s411 + $0x28] sm:$0xff]
        %v418 = vld [vmem:[%s411 + $0x30] sm:$0xff]
        %v419 = vld [vmem:[%s411 + $0x38] sm:$0xff]
        %v420 = vld [vmem:[%s411 + $0x40] sm:$0xff]
        %v421 = vld [vmem:[%s411 + $0x48] sm:$0xff]
        %v422 = vld [vmem:[%s411 + $0x50] sm:$0xff]
        %v423 = vld [vmem:[%s411 + $0x58] sm:$0xff]
        %v424 = vld [vmem:[%s411 + $0x60] sm:$0xff]
        %v425 = vld [vmem:[%s411 + $0x68] sm:$0xff]
        %v426 = vld [vmem:[%s411 + $0x70] sm:$0xff]
        %v427 = vld [vmem:[%s411 + $0x78] sm:$0xff]
        %s428 = scalar_lea.vmem [#allocation5], 640
        %v429 = vld [vmem:[%s428] sm:$0xff]
        %v430 = vld [vmem:[%s428 + $0x8] sm:$0xff]
        %v431 = vld [vmem:[%s428 + $0x10] sm:$0xff]
        %v432 = vld [vmem:[%s428 + $0x18] sm:$0xff]
        %v433 = vld [vmem:[%s428 + $0x20] sm:$0xff]
        %v434 = vld [vmem:[%s428 + $0x28] sm:$0xff]
        %v435 = vld [vmem:[%s428 + $0x30] sm:$0xff]
        %v436 = vld [vmem:[%s428 + $0x38] sm:$0xff]
        %v437 = vld [vmem:[%s428 + $0x40] sm:$0xff]
        %v438 = vld [vmem:[%s428 + $0x48] sm:$0xff]
        %v439 = vld [vmem:[%s428 + $0x50] sm:$0xff]
        %v440 = vld [vmem:[%s428 + $0x58] sm:$0xff]
        %v441 = vld [vmem:[%s428 + $0x60] sm:$0xff]
        %v442 = vld [vmem:[%s428 + $0x68] sm:$0xff]
        %v443 = vld [vmem:[%s428 + $0x70] sm:$0xff]
        %v444 = vld [vmem:[%s428 + $0x78] sm:$0xff]
        %445 = vmatpush.msra.mxu0 %v444
        %446 = vmatpush.msra.mxu0 %v443
        %447 = vmatpush.msra.mxu0 %v442
        %448 = vmatpush.msra.mxu0 %v441
        %449 = vmatpush.msra.mxu0 %v440
        %450 = vmatpush.msra.mxu0 %v439
        %451 = vmatpush.msra.mxu0 %v438
        %452 = vmatpush.msra.mxu0 %v437
        %453 = vmatpush.msra.mxu0 %v436
        %454 = vmatpush.msra.mxu0 %v435
        %455 = vmatpush.msra.mxu0 %v434
        %456 = vmatpush.msra.mxu0 %v433
        %457 = vmatpush.msra.mxu0 %v432
        %458 = vmatpush.msra.mxu0 %v431
        %459 = vmatpush.msra.mxu0 %v430
        %460 = vmatpush.msra.mxu0 %v429
        %461 = vmatmul.f32.gmra.mxu0 %v369
        %v462 = vpop.f32.mrf.mxu0
        %v463 = vadd.f32 0.0, %v462
        %464 = vmatmul.f32.gmra.mxu0 %v370
        %v465 = vpop.f32.mrf.mxu0
        %v466 = vadd.f32 0.0, %v465
        %467 = vdwg.mxu0
        %v470 = vrot.slane %v406, 7
        %v471 = vrot.slane %v409, 7
        %v472 = vsel %vm324, %v470, %v471
        %v475 = vsel %vm324, 0.0, %v470
        %476 = vmatpush.msra.mxu0 %v427
        %477 = vmatpush.msra.mxu0 %v426
        %478 = vmatpush.msra.mxu0 %v425
        %479 = vmatpush.msra.mxu0 %v424
        %480 = vmatpush.msra.mxu0 %v423
        %481 = vmatpush.msra.mxu0 %v422
        %482 = vmatpush.msra.mxu0 %v421
        %483 = vmatpush.msra.mxu0 %v420
        %484 = vmatpush.msra.mxu0 %v419
        %485 = vmatpush.msra.mxu0 %v418
        %486 = vmatpush.msra.mxu0 %v417
        %487 = vmatpush.msra.mxu0 %v416
        %488 = vmatpush.msra.mxu0 %v415
        %489 = vmatpush.msra.mxu0 %v414
        %490 = vmatpush.msra.mxu0 %v413
        %491 = vmatpush.msra.mxu0 %v412
        %492 = vmatmul.f32.gmra.mxu0 %v369
        %v493 = vpop.f32.mrf.mxu0
        %v494 = vadd.f32 %v475, %v493
        %495 = vmatmul.f32.gmra.mxu0 %v370
        %v496 = vpop.f32.mrf.mxu0
        %v497 = vadd.f32 %v472, %v496
        %498 = vdwg.mxu0
        %v501 = vrot.slane %v463, 1
        %v502 = vrot.slane %v466, 1
        %v503 = vsel %vm356, %v501, %v502
        %v506 = vsel %vm356, %v502, 0.0
        %v507 = vadd.f32 %v494, %v503
        %v508 = vadd.f32 %v497, %v506
        %s509 = scalar_lea.vmem [#allocation7], 1
        %v510 = vld [vmem:[%s509] sm:$0x1]
        %v512 = vperm.slane %v510, 0
        %v514 = vadd.f32 %v507, %v512
        %v515 = vadd.f32 %v508, %v512
        %v516 = vsub.f32 0.0, %v514
        %v517 = vsub.f32 0.0, %v515
        %v518 = vmul.f32 %v516, 1.442695
        %v519 = vpow.pop %v518
        %v520 = vmul.f32 %v517, 1.442695
        %v521 = vpow.pop %v520
        %v522 = vadd.f32 %v519, 1.0
        %v523 = vadd.f32 %v521, 1.0
        %v524 = vrcp.pop %v522
        %v525 = vmul.f32 %v522, %v524
        %v526 = vsub.f32 1.0, %v525
        %v527 = vmul.f32 %v524, %v526
        %v528 = vadd.f32 %v524, %v527
        %vm529 = vweird.f32 %v522
        %vm530 = vweird.f32 %v524
        %vm531 = vmor %vm529, %vm530
        %v532 = vsel %vm531, %v524, %v528
        %v533 = vand.u32 2147483647, %v522
        %vm534 = vcmp.eq.f32.partialorder %v533, 8.507059e+37
        %v535 = vand.u32 %v522, 2147483648
        %v536 = vor.u32 1.1754944e-38, %v535
        %v537 = vsel %vm534, %v536, %v532
        %v538 = vrcp.pop %v523
        %v539 = vmul.f32 %v523, %v538
        %v540 = vsub.f32 1.0, %v539
        %v541 = vmul.f32 %v538, %v540
        %v542 = vadd.f32 %v538, %v541
        %vm543 = vweird.f32 %v523
        %vm544 = vweird.f32 %v538
        %vm545 = vmor %vm543, %vm544
        %v546 = vsel %vm545, %v538, %v542
        %v547 = vand.u32 2147483647, %v523
        %vm548 = vcmp.eq.f32.partialorder %v547, 8.507059e+37
        %v549 = vand.u32 %v523, 2147483648
        %v550 = vor.u32 1.1754944e-38, %v549
        %v551 = vsel %vm548, %v550, %v546
        %v552 = vmul.f32 %v514, %v537
        %v553 = vmul.f32 %v515, %v551
        %s554 = scalar_lea.vmem [#allocation5], 768
        %v555 = vld [vmem:[%s554] sm:$0xff]
        %v556 = vld [vmem:[%s554 + $0x8] sm:$0xff]
        %v557 = vld [vmem:[%s554 + $0x10] sm:$0xff]
        %v558 = vld [vmem:[%s554 + $0x18] sm:$0xff]
        %v559 = vld [vmem:[%s554 + $0x20] sm:$0xff]
        %v560 = vld [vmem:[%s554 + $0x28] sm:$0xff]
        %v561 = vld [vmem:[%s554 + $0x30] sm:$0xff]
        %v562 = vld [vmem:[%s554 + $0x38] sm:$0xff]
        %v563 = vld [vmem:[%s554 + $0x40] sm:$0xff]
        %v564 = vld [vmem:[%s554 + $0x48] sm:$0xff]
        %v565 = vld [vmem:[%s554 + $0x50] sm:$0xff]
        %v566 = vld [vmem:[%s554 + $0x58] sm:$0xff]
        %v567 = vld [vmem:[%s554 + $0x60] sm:$0xff]
        %v568 = vld [vmem:[%s554 + $0x68] sm:$0xff]
        %v569 = vld [vmem:[%s554 + $0x70] sm:$0xff]
        %v570 = vld [vmem:[%s554 + $0x78] sm:$0xff]
        %571 = vmatpush.msra.mxu0 %v570
        %572 = vmatpush.msra.mxu0 %v569
        %573 = vmatpush.msra.mxu0 %v568
        %574 = vmatpush.msra.mxu0 %v567
        %575 = vmatpush.msra.mxu0 %v566
        %576 = vmatpush.msra.mxu0 %v565
        %577 = vmatpush.msra.mxu0 %v564
        %578 = vmatpush.msra.mxu0 %v563
        %579 = vmatpush.msra.mxu0 %v562
        %580 = vmatpush.msra.mxu0 %v561
        %581 = vmatpush.msra.mxu0 %v560
        %582 = vmatpush.msra.mxu0 %v559
        %583 = vmatpush.msra.mxu0 %v558
        %584 = vmatpush.msra.mxu0 %v557
        %585 = vmatpush.msra.mxu0 %v556
        %586 = vmatpush.msra.mxu0 %v555
        %587 = vmatmul.f32.gmra.mxu0 %v552
        %v588 = vpop.f32.mrf.mxu0
        %v589 = vadd.f32 0.0, %v588
        %590 = vmatmul.f32.gmra.mxu0 %v553
        %v591 = vpop.f32.mrf.mxu0
        %v592 = vadd.f32 0.0, %v591
        %593 = vdwg.mxu0
        %s594 = scalar_lea.vmem [#allocation5], 896
        %v595 = vld [vmem:[%s594] sm:$0xff]
        %v596 = vld [vmem:[%s594 + $0x8] sm:$0xff]
        %v597 = vld [vmem:[%s594 + $0x10] sm:$0xff]
        %v598 = vld [vmem:[%s594 + $0x18] sm:$0xff]
        %v599 = vld [vmem:[%s594 + $0x20] sm:$0xff]
        %v600 = vld [vmem:[%s594 + $0x28] sm:$0xff]
        %v601 = vld [vmem:[%s594 + $0x30] sm:$0xff]
        %v602 = vld [vmem:[%s594 + $0x38] sm:$0xff]
        %v603 = vld [vmem:[%s594 + $0x40] sm:$0xff]
        %v604 = vld [vmem:[%s594 + $0x48] sm:$0xff]
        %v605 = vld [vmem:[%s594 + $0x50] sm:$0xff]
        %v606 = vld [vmem:[%s594 + $0x58] sm:$0xff]
        %v607 = vld [vmem:[%s594 + $0x60] sm:$0xff]
        %v608 = vld [vmem:[%s594 + $0x68] sm:$0xff]
        %v609 = vld [vmem:[%s594 + $0x70] sm:$0xff]
        %v610 = vld [vmem:[%s594 + $0x78] sm:$0xff]
        %s611 = scalar_lea.vmem [#allocation5], 1024
        %v612 = vld [vmem:[%s611] sm:$0xff]
        %v613 = vld [vmem:[%s611 + $0x8] sm:$0xff]
        %v614 = vld [vmem:[%s611 + $0x10] sm:$0xff]
        %v615 = vld [vmem:[%s611 + $0x18] sm:$0xff]
        %v616 = vld [vmem:[%s611 + $0x20] sm:$0xff]
        %v617 = vld [vmem:[%s611 + $0x28] sm:$0xff]
        %v618 = vld [vmem:[%s611 + $0x30] sm:$0xff]
        %v619 = vld [vmem:[%s611 + $0x38] sm:$0xff]
        %v620 = vld [vmem:[%s611 + $0x40] sm:$0xff]
        %v621 = vld [vmem:[%s611 + $0x48] sm:$0xff]
        %v622 = vld [vmem:[%s611 + $0x50] sm:$0xff]
        %v623 = vld [vmem:[%s611 + $0x58] sm:$0xff]
        %v624 = vld [vmem:[%s611 + $0x60] sm:$0xff]
        %v625 = vld [vmem:[%s611 + $0x68] sm:$0xff]
        %v626 = vld [vmem:[%s611 + $0x70] sm:$0xff]
        %v627 = vld [vmem:[%s611 + $0x78] sm:$0xff]
        %628 = vmatpush.msra.mxu0 %v627
        %629 = vmatpush.msra.mxu0 %v626
        %630 = vmatpush.msra.mxu0 %v625
        %631 = vmatpush.msra.mxu0 %v624
        %632 = vmatpush.msra.mxu0 %v623
        %633 = vmatpush.msra.mxu0 %v622
        %634 = vmatpush.msra.mxu0 %v621
        %635 = vmatpush.msra.mxu0 %v620
        %636 = vmatpush.msra.mxu0 %v619
        %637 = vmatpush.msra.mxu0 %v618
        %638 = vmatpush.msra.mxu0 %v617
        %639 = vmatpush.msra.mxu0 %v616
        %640 = vmatpush.msra.mxu0 %v615
        %641 = vmatpush.msra.mxu0 %v614
        %642 = vmatpush.msra.mxu0 %v613
        %643 = vmatpush.msra.mxu0 %v612
        %644 = vmatmul.f32.gmra.mxu0 %v552
        %v645 = vpop.f32.mrf.mxu0
        %v646 = vadd.f32 0.0, %v645
        %647 = vmatmul.f32.gmra.mxu0 %v553
        %v648 = vpop.f32.mrf.mxu0
        %v649 = vadd.f32 0.0, %v648
        %650 = vdwg.mxu0
        %v653 = vrot.slane %v589, 7
        %v654 = vrot.slane %v592, 7
        %v655 = vsel %vm324, %v653, %v654
        %v658 = vsel %vm324, 0.0, %v653
        %659 = vmatpush.msra.mxu0 %v610
        %660 = vmatpush.msra.mxu0 %v609
        %661 = vmatpush.msra.mxu0 %v608
        %662 = vmatpush.msra.mxu0 %v607
        %663 = vmatpush.msra.mxu0 %v606
        %664 = vmatpush.msra.mxu0 %v605
        %665 = vmatpush.msra.mxu0 %v604
        %666 = vmatpush.msra.mxu0 %v603
        %667 = vmatpush.msra.mxu0 %v602
        %668 = vmatpush.msra.mxu0 %v601
        %669 = vmatpush.msra.mxu0 %v600
        %670 = vmatpush.msra.mxu0 %v599
        %671 = vmatpush.msra.mxu0 %v598
        %672 = vmatpush.msra.mxu0 %v597
        %673 = vmatpush.msra.mxu0 %v596
        %674 = vmatpush.msra.mxu0 %v595
        %675 = vmatmul.f32.gmra.mxu0 %v552
        %v676 = vpop.f32.mrf.mxu0
        %v677 = vadd.f32 %v658, %v676
        %678 = vmatmul.f32.gmra.mxu0 %v553
        %v679 = vpop.f32.mrf.mxu0
        %v680 = vadd.f32 %v655, %v679
        %681 = vdwg.mxu0
        %v684 = vrot.slane %v646, 1
        %v685 = vrot.slane %v649, 1
        %v686 = vsel %vm356, %v684, %v685
        %v689 = vsel %vm356, %v685, 0.0
        %v690 = vadd.f32 %v677, %v686
        %v691 = vadd.f32 %v680, %v689
        %s692 = scalar_lea.vmem [#allocation7], 2
        %v693 = vld [vmem:[%s692] sm:$0x1]
        %v695 = vperm.slane %v693, 0
        %v697 = vadd.f32 %v690, %v695
        %v698 = vadd.f32 %v691, %v695
        %v699 = vsub.f32 0.0, %v697
        %v700 = vsub.f32 0.0, %v698
        %v701 = vmul.f32 %v699, 1.442695
        %v702 = vpow.pop %v701
        %v703 = vmul.f32 %v700, 1.442695
        %v704 = vpow.pop %v703
        %v705 = vadd.f32 %v702, 1.0
        %v706 = vadd.f32 %v704, 1.0
        %v707 = vrcp.pop %v705
        %v708 = vmul.f32 %v705, %v707
        %v709 = vsub.f32 1.0, %v708
        %v710 = vmul.f32 %v707, %v709
        %v711 = vadd.f32 %v707, %v710
        %vm712 = vweird.f32 %v705
        %vm713 = vweird.f32 %v707
        %vm714 = vmor %vm712, %vm713
        %v715 = vsel %vm714, %v707, %v711
        %v716 = vand.u32 2147483647, %v705
        %vm717 = vcmp.eq.f32.partialorder %v716, 8.507059e+37
        %v718 = vand.u32 %v705, 2147483648
        %v719 = vor.u32 1.1754944e-38, %v718
        %v720 = vsel %vm717, %v719, %v715
        %v721 = vrcp.pop %v706
        %v722 = vmul.f32 %v706, %v721
        %v723 = vsub.f32 1.0, %v722
        %v724 = vmul.f32 %v721, %v723
        %v725 = vadd.f32 %v721, %v724
        %vm726 = vweird.f32 %v706
        %vm727 = vweird.f32 %v721
        %vm728 = vmor %vm726, %vm727
        %v729 = vsel %vm728, %v721, %v725
        %v730 = vand.u32 2147483647, %v706
        %vm731 = vcmp.eq.f32.partialorder %v730, 8.507059e+37
        %v732 = vand.u32 %v706, 2147483648
        %v733 = vor.u32 1.1754944e-38, %v732
        %v734 = vsel %vm731, %v733, %v729
        %v735 = vmul.f32 %v697, %v720
        %v736 = vmul.f32 %v698, %v734
        %s737 = scalar_lea.vmem [#allocation5], 1152
        %v738 = vld [vmem:[%s737] sm:$0xff]
        %v739 = vld [vmem:[%s737 + $0x8] sm:$0xff]
        %v740 = vld [vmem:[%s737 + $0x10] sm:$0xff]
        %v741 = vld [vmem:[%s737 + $0x18] sm:$0xff]
        %v742 = vld [vmem:[%s737 + $0x20] sm:$0xff]
        %v743 = vld [vmem:[%s737 + $0x28] sm:$0xff]
        %v744 = vld [vmem:[%s737 + $0x30] sm:$0xff]
        %v745 = vld [vmem:[%s737 + $0x38] sm:$0xff]
        %v746 = vld [vmem:[%s737 + $0x40] sm:$0xff]
        %v747 = vld [vmem:[%s737 + $0x48] sm:$0xff]
        %v748 = vld [vmem:[%s737 + $0x50] sm:$0xff]
        %v749 = vld [vmem:[%s737 + $0x58] sm:$0xff]
        %v750 = vld [vmem:[%s737 + $0x60] sm:$0xff]
        %v751 = vld [vmem:[%s737 + $0x68] sm:$0xff]
        %v752 = vld [vmem:[%s737 + $0x70] sm:$0xff]
        %v753 = vld [vmem:[%s737 + $0x78] sm:$0xff]
        %754 = vmatpush.msra.mxu0 %v753
        %755 = vmatpush.msra.mxu0 %v752
        %756 = vmatpush.msra.mxu0 %v751
        %757 = vmatpush.msra.mxu0 %v750
        %758 = vmatpush.msra.mxu0 %v749
        %759 = vmatpush.msra.mxu0 %v748
        %760 = vmatpush.msra.mxu0 %v747
        %761 = vmatpush.msra.mxu0 %v746
        %762 = vmatpush.msra.mxu0 %v745
        %763 = vmatpush.msra.mxu0 %v744
        %764 = vmatpush.msra.mxu0 %v743
        %765 = vmatpush.msra.mxu0 %v742
        %766 = vmatpush.msra.mxu0 %v741
        %767 = vmatpush.msra.mxu0 %v740
        %768 = vmatpush.msra.mxu0 %v739
        %769 = vmatpush.msra.mxu0 %v738
        %770 = vmatmul.f32.gmra.mxu0 %v735
        %v771 = vpop.f32.mrf.mxu0
        %v772 = vadd.f32 0.0, %v771
        %773 = vmatmul.f32.gmra.mxu0 %v736
        %v774 = vpop.f32.mrf.mxu0
        %v775 = vadd.f32 0.0, %v774
        %776 = vdwg.mxu0
        %s777 = scalar_lea.vmem [#allocation5], 1280
        %v778 = vld [vmem:[%s777] sm:$0xff]
        %v779 = vld [vmem:[%s777 + $0x8] sm:$0xff]
        %v780 = vld [vmem:[%s777 + $0x10] sm:$0xff]
        %v781 = vld [vmem:[%s777 + $0x18] sm:$0xff]
        %v782 = vld [vmem:[%s777 + $0x20] sm:$0xff]
        %v783 = vld [vmem:[%s777 + $0x28] sm:$0xff]
        %v784 = vld [vmem:[%s777 + $0x30] sm:$0xff]
        %v785 = vld [vmem:[%s777 + $0x38] sm:$0xff]
        %v786 = vld [vmem:[%s777 + $0x40] sm:$0xff]
        %v787 = vld [vmem:[%s777 + $0x48] sm:$0xff]
        %v788 = vld [vmem:[%s777 + $0x50] sm:$0xff]
        %v789 = vld [vmem:[%s777 + $0x58] sm:$0xff]
        %v790 = vld [vmem:[%s777 + $0x60] sm:$0xff]
        %v791 = vld [vmem:[%s777 + $0x68] sm:$0xff]
        %v792 = vld [vmem:[%s777 + $0x70] sm:$0xff]
        %v793 = vld [vmem:[%s777 + $0x78] sm:$0xff]
        %s794 = scalar_lea.vmem [#allocation5], 1408
        %v795 = vld [vmem:[%s794] sm:$0xff]
        %v796 = vld [vmem:[%s794 + $0x8] sm:$0xff]
        %v797 = vld [vmem:[%s794 + $0x10] sm:$0xff]
        %v798 = vld [vmem:[%s794 + $0x18] sm:$0xff]
        %v799 = vld [vmem:[%s794 + $0x20] sm:$0xff]
        %v800 = vld [vmem:[%s794 + $0x28] sm:$0xff]
        %v801 = vld [vmem:[%s794 + $0x30] sm:$0xff]
        %v802 = vld [vmem:[%s794 + $0x38] sm:$0xff]
        %v803 = vld [vmem:[%s794 + $0x40] sm:$0xff]
        %v804 = vld [vmem:[%s794 + $0x48] sm:$0xff]
        %v805 = vld [vmem:[%s794 + $0x50] sm:$0xff]
        %v806 = vld [vmem:[%s794 + $0x58] sm:$0xff]
        %v807 = vld [vmem:[%s794 + $0x60] sm:$0xff]
        %v808 = vld [vmem:[%s794 + $0x68] sm:$0xff]
        %v809 = vld [vmem:[%s794 + $0x70] sm:$0xff]
        %v810 = vld [vmem:[%s794 + $0x78] sm:$0xff]
        %811 = vmatpush.msra.mxu0 %v810
        %812 = vmatpush.msra.mxu0 %v809
        %813 = vmatpush.msra.mxu0 %v808
        %814 = vmatpush.msra.mxu0 %v807
        %815 = vmatpush.msra.mxu0 %v806
        %816 = vmatpush.msra.mxu0 %v805
        %817 = vmatpush.msra.mxu0 %v804
        %818 = vmatpush.msra.mxu0 %v803
        %819 = vmatpush.msra.mxu0 %v802
        %820 = vmatpush.msra.mxu0 %v801
        %821 = vmatpush.msra.mxu0 %v800
        %822 = vmatpush.msra.mxu0 %v799
        %823 = vmatpush.msra.mxu0 %v798
        %824 = vmatpush.msra.mxu0 %v797
        %825 = vmatpush.msra.mxu0 %v796
        %826 = vmatpush.msra.mxu0 %v795
        %827 = vmatmul.f32.gmra.mxu0 %v735
        %v828 = vpop.f32.mrf.mxu0
        %v829 = vadd.f32 0.0, %v828
        %830 = vmatmul.f32.gmra.mxu0 %v736
        %v831 = vpop.f32.mrf.mxu0
        %v832 = vadd.f32 0.0, %v831
        %833 = vdwg.mxu0
        %v836 = vrot.slane %v772, 7
        %v837 = vrot.slane %v775, 7
        %v838 = vsel %vm324, %v836, %v837
        %v841 = vsel %vm324, 0.0, %v836
        %842 = vmatpush.msra.mxu0 %v793
        %843 = vmatpush.msra.mxu0 %v792
        %844 = vmatpush.msra.mxu0 %v791
        %845 = vmatpush.msra.mxu0 %v790
        %846 = vmatpush.msra.mxu0 %v789
        %847 = vmatpush.msra.mxu0 %v788
        %848 = vmatpush.msra.mxu0 %v787
        %849 = vmatpush.msra.mxu0 %v786
        %850 = vmatpush.msra.mxu0 %v785
        %851 = vmatpush.msra.mxu0 %v784
        %852 = vmatpush.msra.mxu0 %v783
        %853 = vmatpush.msra.mxu0 %v782
        %854 = vmatpush.msra.mxu0 %v781
        %855 = vmatpush.msra.mxu0 %v780
        %856 = vmatpush.msra.mxu0 %v779
        %857 = vmatpush.msra.mxu0 %v778
        %858 = vmatmul.f32.gmra.mxu0 %v735
        %v859 = vpop.f32.mrf.mxu0
        %v860 = vadd.f32 %v841, %v859
        %861 = vmatmul.f32.gmra.mxu0 %v736
        %v862 = vpop.f32.mrf.mxu0
        %v863 = vadd.f32 %v838, %v862
        %864 = vdwg.mxu0
        %v867 = vrot.slane %v829, 1
        %v868 = vrot.slane %v832, 1
        %v869 = vsel %vm356, %v867, %v868
        %v872 = vsel %vm356, %v868, 0.0
        %v873 = vadd.f32 %v860, %v869
        %v874 = vadd.f32 %v863, %v872
        %s875 = scalar_lea.vmem [#allocation7], 3
        %v876 = vld [vmem:[%s875] sm:$0x1]
        %v878 = vperm.slane %v876, 0
        %v880 = vadd.f32 %v873, %v878
        %v881 = vadd.f32 %v874, %v878
        %882 = vst [vmem:[%s223] sm:$0xff] %v880
        %883 = vst [vmem:[%s223 + $0x8] sm:$0xff] %v881
        %s884 = sand.u32 %s97, 1
        %s885 = scalar_lea.sflag [#allocation4], %s884
        %s886 = sand.u32 %s97, 1
        %s887 = smul.addr %s886, 16
        %s888 = scalar_lea.vmem [#allocation8], %s887
        // Predicated region
        $region45: #{tpu_custom_call.1} parent=31 // pred_check
          %p889 = pneg %p107
        $region46: #{tpu_custom_call.1} parent=31 // pred_check_branch
          %891 = sbr.rel (%p889) target = $region48
        $region47: #{tpu_custom_call.1} parent=31 // pred_region
          %893 = vsyncadd %s885, 0
          %s894 = smul.addr %s21, 2
          %s895 = smul.addr %s894, 8
          %s896 = scalar_lea.hbm %s3, %s895
          %s897 = sshll.u32 %s888, 4
          %s898 = int_to_ptr.vmem [resolvable:$true] %s897
          %s899 = sshll.u32 %s896, 4
          %s900 = int_to_ptr.hbm [resolvable:$true] %s899
          %905 = dma.vmem_to_hbm [thread:$0]  %s898, 256, %s900, %s885, 128, 128, 8
        $region48: #{tpu_custom_call.1} parent=31 // pred_fallthru
          _
      $region32: #{tpu_custom_call.1} parent=5 // pred_fallthru
        _
      %p906 = scmp.le.s32.totalorder 2, %s16
      // Predicated region
      $region49: #{tpu_custom_call.1} parent=5 // pred_check
        %p907 = pneg %p906
      $region50: #{tpu_custom_call.1} parent=5 // pred_check_branch
        %909 = sbr.rel (%p907) target = $region52
      $region51: #{tpu_custom_call.1} parent=5 // pred_region
        %s910 = ssub.s32 %s16, 2
        // Predicated region
        $region53: #{tpu_custom_call.1} parent=51 // pred_check
          %p911 = pneg %p113
        $region54: #{tpu_custom_call.1} parent=51 // pred_check_branch
          %913 = sbr.rel (%p911) target = $region56
        $region55: #{tpu_custom_call.1} parent=51 // pred_region
          %s914 = sand.u32 %s98, 1
          %s915 = scalar_lea.sflag [#allocation4], %s914
          %s916 = sand.u32 %s98, 1
          %s917 = smul.addr %s916, 16
          %s918 = scalar_lea.vmem [#allocation8], %s917
          %920 = dma.done %s915, 256
        $region56: #{tpu_custom_call.1} parent=51 // pred_fallthru
          _
      $region52: #{tpu_custom_call.1} parent=5 // pred_fallthru
        _
    $region6: #{tpu_custom_call.1} parent=1 // loop_footer
      %s20 = sadd.s32 1, %s16
    $region7: #{tpu_custom_call.1} parent=1 // loop_footer_branch
      %15 = sbr.rel target = $region3
    $region8: #{tpu_custom_call.1} parent=1 // loop_exit
      _
    %921 = vsyncpa [#allocation3], 1
    %s922 = scalar_lea.sflag [#allocation3], 1
    %923 = vsyncpa %s922, 1
    %924 = vsyncpa [#allocation6], 1
    %925 = vsyncpa [#allocation4], 1
    %s926 = scalar_lea.sflag [#allocation4], 1
    %927 = vsyncpa %s926, 1

</llo_original>
